<compile_context>
chip_gen: v7x
topology: tpu7x:2x2x1
jax: 0.10.0
libtpu: 0.0.40
codegen_flags: <defaults>
</compile_context>

<pallas_src>
import numpy as np
import jax
import jax.numpy as jnp
from jax import lax
from jax.experimental import pallas as pl
from jax.experimental.pallas import tpu as pltpu

NEG = -1e30  # finite large-negative mask value (avoids -inf NaN hazards)


def bingram_kernel(idx_ref, emb_ref, pos_ref, wq_ref, wk_ref, wv_ref,
                   mask_ref, wlm_ref, blm_ref, out_ref):
    # idx_ref : (BT, 1)   int32 token ids
    # emb_ref : (Vt, C)   token-embedding table, vocab rows zero-padded to 128
    # pos_ref : (BT, C)   position embeddings, pre-tiled over the batch
    # wq/wk/wv: (C, C)    projection weights, already (in, out)
    # mask_ref: (BT, BT)  additive mask: 0 where allowed, -1e30 elsewhere
    # wlm_ref : (C, Vp)   lm_head weight, padded cols zero
    # blm_ref : (1, Vp)   lm_head bias, padded cols -1e30
    # out_ref : (BT, Vp)  lane-dense padded logits
    BT = out_ref.shape[0]
    Vt = emb_ref.shape[0]
    C = pos_ref.shape[1]

    # Token gather as a one-hot matmul (rides the otherwise-idle MXU).
    col = lax.broadcasted_iota(jnp.int32, (BT, Vt), 1)
    onehot = (col == idx_ref[...]).astype(jnp.float32)                    # (BT, Vt)
    tok = jnp.dot(onehot, emb_ref[...], preferred_element_type=jnp.float32)
    x = tok + pos_ref[...]                                                # (BT, C)

    # Three lane-aligned projections (outputs start at lane 0, no slicing).
    q = jnp.dot(x, wq_ref[...], preferred_element_type=jnp.float32)
    k = jnp.dot(x, wk_ref[...], preferred_element_type=jnp.float32)
    v = jnp.dot(x, wv_ref[...], preferred_element_type=jnp.float32)

    # Single (BT, BT) score matmul; contraction over C without an explicit k.T.
    wei = lax.dot_general(q, k, (((1,), (1,)), ((), ())),
                          preferred_element_type=jnp.float32)
    wei = wei * (C ** -0.5) + mask_ref[...]

    # Exact softmax over the last dim (division cost is negligible at (BT,1)).
    m = jnp.max(wei, axis=-1, keepdims=True)
    p = jnp.exp(wei - m)
    wei = p / jnp.sum(p, axis=-1, keepdims=True)

    att = jnp.dot(wei, v, preferred_element_type=jnp.float32)             # (BT, C)
    logits = jnp.dot(att, wlm_ref[...], preferred_element_type=jnp.float32)
    out_ref[...] = (logits + blm_ref[...]).astype(out_ref.dtype)


def prepare_params(params, B, T):
    """One-time (cached) preprocessing of the torch-layout parameters for fixed (B, T)."""
    tok_emb = jnp.asarray(params["tok_emb"], jnp.float32)      # (V, C)
    pos_emb = jnp.asarray(params["pos_emb"], jnp.float32)      # (block_size, C)
    V, C = tok_emb.shape
    Vt = ((V + 127) // 128) * 128        # padded vocab rows for the one-hot gather
    Vp = ((V + 127) // 128) * 128        # lane-dense lm_head output width
    BT = B * T

    emb_pad = jnp.zeros((Vt, C), jnp.float32).at[:V].set(tok_emb)
    pos_tiled = jnp.tile(pos_emb[:T], (B, 1))                  # (BT, C)

    wq = jnp.asarray(params["q_w"], jnp.float32).T             # torch (out,in) -> (in,out)
    wk = jnp.asarray(params["k_w"], jnp.float32).T
    wv = jnp.asarray(params["v_w"], jnp.float32).T

    wlm = jnp.zeros((C, Vp), jnp.float32).at[:, :V].set(
        jnp.asarray(params["lm_w"], jnp.float32).T)            # (C, Vp)
    blm = jnp.full((1, Vp), NEG, jnp.float32).at[0, :V].set(
        jnp.asarray(params["lm_b"], jnp.float32))               # (1, Vp)

    # Block-diagonal (per-batch) causal additive mask, compile-time constant.
    r = np.arange(BT)
    same_batch = (r[:, None] // T) == (r[None, :] // T)
    causal = (r[:, None] % T) >= (r[None, :] % T)
    mask = jnp.asarray(np.where(same_batch & causal, 0.0, NEG).astype(np.float32))

    return dict(B=B, T=T, C=C, V=V, Vt=Vt, Vp=Vp,
                emb=emb_pad, pos=pos_tiled, wq=wq, wk=wk, wv=wv,
                mask=mask, wlm=wlm, blm=blm)


def bingram_forward(idx, prep, targets=None):
    """Forward pass of BingramLanguageModel.  Returns (logits, loss)."""
    B, T = idx.shape
    assert (B, T) == (prep["B"], prep["T"]), "prepare_params was built for a different (B, T)"
    C, V, Vp = prep["C"], prep["V"], prep["Vp"]
    BT = B * T
    idx2 = idx.reshape(BT, 1).astype(jnp.int32)     # layout no-op reshape in the wrapper

    vspec = pl.BlockSpec(memory_space=pltpu.MemorySpace.VMEM)

    flops = (2 * BT * prep["Vt"] * C     # one-hot embedding gather
             + 3 * 2 * BT * C * C        # q/k/v projections
             + 2 * BT * BT * C           # scores
             + 2 * BT * BT * C           # attention-weighted values
             + 2 * BT * C * Vp)          # lm_head
    bytes_accessed = 4 * (BT + prep["Vt"] * C + BT * C + 3 * C * C
                          + BT * BT + C * Vp + Vp + BT * Vp)

    logits_padded = pl.pallas_call(
        bingram_kernel,
        out_shape=jax.ShapeDtypeStruct((BT, Vp), jnp.float32),
        in_specs=[vspec] * 9,
        out_specs=vspec,
        cost_estimate=pl.CostEstimate(
            flops=flops, transcendentals=BT * BT, bytes_accessed=bytes_accessed),
    )(idx2, prep["emb"], prep["pos"], prep["wq"], prep["wk"], prep["wv"],
      prep["mask"], prep["wlm"], prep["blm"])

    if targets is None:
        return logits_padded[:, :V].reshape(B, T, V), None

    # Loss computed on the lane-dense padded slab (padded cols are -1e30 ->
    # they contribute exactly 0 to logsumexp; targets < V so they are never picked).
    t = targets.reshape(-1)
    logz = jax.nn.logsumexp(logits_padded, axis=-1)
    picked = jnp.take_along_axis(logits_padded, t[:, None], axis=1)[:, 0]
    loss = jnp.mean(logz - picked)
    # Match torch: in the targets branch the returned logits are the (B*T, V) view.
    return logits_padded[:, :V], loss


def reference_forward(idx, params, targets=None):
    """Pure-JAX reference of the PyTorch forward for correctness checking."""
    tok = jnp.take(params["tok_emb"], idx, axis=0)
    T = idx.shape[1]
    x = tok + params["pos_emb"][:T]
    C = x.shape[-1]
    q = x @ params["q_w"].T
    k = x @ params["k_w"].T
    v = x @ params["v_w"].T
    wei = (q @ jnp.swapaxes(k, -2, -1)) * (C ** -0.5)
    tril = jnp.tril(jnp.ones((T, T)))
    wei = jnp.where(tril == 0, -jnp.inf, wei)
    wei = jax.nn.softmax(wei, axis=-1)
    out = wei @ v
    logits = out @ params["lm_w"].T + params["lm_b"]
    if targets is None:
        return logits, None
    B, T, V = logits.shape
    flat = logits.reshape(B * T, V)
    t = targets.reshape(-1)
    loss = jnp.mean(jax.nn.logsumexp(flat, axis=-1)
                    - jnp.take_along_axis(flat, t[:, None], axis=1)[:, 0])
    return logits, loss


if __name__ == "__main__":
    # Small, forward-consistent shapes.
    block_size = 8
    vocab_size = 65
    n_embd = 32
    B, T = 2, 8

    key = jax.random.PRNGKey(0)
    ks = jax.random.split(key, 9)

    params = {
        "tok_emb": jax.random.normal(ks[0], (vocab_size, n_embd), jnp.float32) * 0.02,
        "pos_emb": jax.random.normal(ks[1], (block_size, n_embd), jnp.float32) * 0.02,
        "q_w": jax.random.normal(ks[2], (n_embd, n_embd), jnp.float32) * 0.02,
        "k_w": jax.random.normal(ks[3], (n_embd, n_embd), jnp.float32) * 0.02,
        "v_w": jax.random.normal(ks[4], (n_embd, n_embd), jnp.float32) * 0.02,
        "lm_w": jax.random.normal(ks[5], (vocab_size, n_embd), jnp.float32) * 0.02,
        "lm_b": jax.random.normal(ks[6], (vocab_size,), jnp.float32) * 0.02,
    }

    idx = jax.random.randint(ks[7], (B, T), 0, vocab_size, dtype=jnp.int32)
    targets = jax.random.randint(ks[8], (B, T), 0, vocab_size, dtype=jnp.int32)

    # One-time parameter preprocessing (NOT in the per-call path).
    prep = prepare_params(params, B, T)

    # targets=None path (pure forward).
    logits, loss = bingram_forward(idx, prep)
    logits = jax.block_until_ready(logits)

    ref_logits, _ = reference_forward(idx, params)
    np.testing.assert_allclose(np.asarray(logits), np.asarray(ref_logits),
                               rtol=1e-4, atol=1e-6)
    assert logits.shape == (B, T, vocab_size)
    assert loss is None

    # targets path (loss computed on the lane-dense padded slab).
    logits2, loss2 = bingram_forward(idx, prep, targets)
    loss2 = jax.block_until_ready(loss2)
    _, ref_loss = reference_forward(idx, params, targets)
    np.testing.assert_allclose(np.asarray(logits2),
                               np.asarray(ref_logits).reshape(B * T, vocab_size),
                               rtol=1e-4, atol=1e-6)
    np.testing.assert_allclose(np.asarray(loss2), np.asarray(ref_loss),
                               rtol=1e-4, atol=1e-6)

    print("KERNEL_OK")
</pallas_src>

<mosaic_0001>
module attributes {stable_mosaic.version = 11 : i64} {
  func.func @bingram_kernel(%arg0: memref<16x1xi32, #tpu.memory_space<vmem>>, %arg1: memref<128x32xf32, #tpu.memory_space<vmem>>, %arg2: memref<16x32xf32, #tpu.memory_space<vmem>>, %arg3: memref<32x32xf32, #tpu.memory_space<vmem>>, %arg4: memref<32x32xf32, #tpu.memory_space<vmem>>, %arg5: memref<32x32xf32, #tpu.memory_space<vmem>>, %arg6: memref<16x16xf32, #tpu.memory_space<vmem>>, %arg7: memref<32x128xf32, #tpu.memory_space<vmem>>, %arg8: memref<1x128xf32, #tpu.memory_space<vmem>>, %arg9: memref<16x128xf32, #tpu.memory_space<vmem>>) attributes {dimension_semantics = [], scalar_prefetch = 0 : i64, scratch_operands = 0 : i64, tpu.core_type = #tpu.core_type<tc>} {
    %0 = tpu.iota {dimensions = array<i32: 1>} : vector<16x128xi32>
    %c0 = arith.constant 0 : index
    %c0_0 = arith.constant 0 : index
    %1 = vector.load %arg0[%c0, %c0_0] : memref<16x1xi32, #tpu.memory_space<vmem>>, vector<16x1xi32>
    %2 = vector.broadcast %1 : vector<16x1xi32> to vector<16x128xi32>
    %3 = arith.cmpi eq, %0, %2 : vector<16x128xi32>
    %4 = arith.extui %3 : vector<16x128xi1> to vector<16x128xi32>
    %5 = arith.sitofp %4 : vector<16x128xi32> to vector<16x128xf32>
    %c0_1 = arith.constant 0 : index
    %c0_2 = arith.constant 0 : index
    %6 = vector.load %arg1[%c0_1, %c0_2] : memref<128x32xf32, #tpu.memory_space<vmem>>, vector<128x32xf32>
    %cst = arith.constant dense<0.000000e+00> : vector<16x32xf32>
    %7 = tpu.matmul %5, %6, %cst {dimension_numbers = #tpu.dot_dimension_numbers<[1], [0], [0], [1], [0, 0, 1, 1], [], []>} : vector<16x128xf32>, vector<128x32xf32>, vector<16x32xf32> -> vector<16x32xf32>
    %c0_3 = arith.constant 0 : index
    %c0_4 = arith.constant 0 : index
    %8 = vector.load %arg2[%c0_3, %c0_4] : memref<16x32xf32, #tpu.memory_space<vmem>>, vector<16x32xf32>
    %9 = arith.addf %7, %8 : vector<16x32xf32>
    %c0_5 = arith.constant 0 : index
    %c0_6 = arith.constant 0 : index
    %10 = vector.load %arg3[%c0_5, %c0_6] : memref<32x32xf32, #tpu.memory_space<vmem>>, vector<32x32xf32>
    %cst_7 = arith.constant dense<0.000000e+00> : vector<16x32xf32>
    %11 = tpu.matmul %9, %10, %cst_7 {dimension_numbers = #tpu.dot_dimension_numbers<[1], [0], [0], [1], [0, 0, 1, 1], [], []>} : vector<16x32xf32>, vector<32x32xf32>, vector<16x32xf32> -> vector<16x32xf32>
    %c0_8 = arith.constant 0 : index
    %c0_9 = arith.constant 0 : index
    %12 = vector.load %arg4[%c0_8, %c0_9] : memref<32x32xf32, #tpu.memory_space<vmem>>, vector<32x32xf32>
    %cst_10 = arith.constant dense<0.000000e+00> : vector<16x32xf32>
    %13 = tpu.matmul %9, %12, %cst_10 {dimension_numbers = #tpu.dot_dimension_numbers<[1], [0], [0], [1], [0, 0, 1, 1], [], []>} : vector<16x32xf32>, vector<32x32xf32>, vector<16x32xf32> -> vector<16x32xf32>
    %c0_11 = arith.constant 0 : index
    %c0_12 = arith.constant 0 : index
    %14 = vector.load %arg5[%c0_11, %c0_12] : memref<32x32xf32, #tpu.memory_space<vmem>>, vector<32x32xf32>
    %cst_13 = arith.constant dense<0.000000e+00> : vector<16x32xf32>
    %15 = tpu.matmul %9, %14, %cst_13 {dimension_numbers = #tpu.dot_dimension_numbers<[1], [0], [0], [1], [0, 0, 1, 1], [], []>} : vector<16x32xf32>, vector<32x32xf32>, vector<16x32xf32> -> vector<16x32xf32>
    %cst_14 = arith.constant dense<0.000000e+00> : vector<16x16xf32>
    %16 = tpu.matmul %11, %13, %cst_14 {dimension_numbers = #tpu.dot_dimension_numbers<[1], [1], [0], [0], [0, 0, 1, 0], [], []>} : vector<16x32xf32>, vector<16x32xf32>, vector<16x16xf32> -> vector<16x16xf32>
    %cst_15 = arith.constant 0.176776692 : f32
    %17 = vector.broadcast %cst_15 : f32 to vector<16x16xf32>
    %18 = arith.mulf %16, %17 : vector<16x16xf32>
    %c0_16 = arith.constant 0 : index
    %c0_17 = arith.constant 0 : index
    %19 = vector.load %arg6[%c0_16, %c0_17] : memref<16x16xf32, #tpu.memory_space<vmem>>, vector<16x16xf32>
    %20 = arith.addf %18, %19 : vector<16x16xf32>
    %cst_18 = arith.constant dense<0xFF800000> : vector<16xf32>
    %21 = vector.multi_reduction <maximumf>, %20, %cst_18 [1] : vector<16x16xf32> to vector<16xf32>
    %22 = vector.shape_cast %21 : vector<16xf32> to vector<16x1xf32>
    %23 = vector.broadcast %22 : vector<16x1xf32> to vector<16x16xf32>
    %24 = arith.subf %20, %23 : vector<16x16xf32>
    %25 = math.exp %24 : vector<16x16xf32>
    %cst_19 = arith.constant dense<0.000000e+00> : vector<16xf32>
    %26 = vector.multi_reduction <add>, %25, %cst_19 [1] : vector<16x16xf32> to vector<16xf32>
    %27 = vector.shape_cast %26 : vector<16xf32> to vector<16x1xf32>
    %28 = vector.broadcast %27 : vector<16x1xf32> to vector<16x16xf32>
    %29 = arith.divf %25, %28 : vector<16x16xf32>
    %cst_20 = arith.constant dense<0.000000e+00> : vector<16x32xf32>
    %30 = tpu.matmul %29, %15, %cst_20 {dimension_numbers = #tpu.dot_dimension_numbers<[1], [0], [0], [1], [0, 0, 1, 1], [], []>} : vector<16x16xf32>, vector<16x32xf32>, vector<16x32xf32> -> vector<16x32xf32>
    %c0_21 = arith.constant 0 : index
    %c0_22 = arith.constant 0 : index
    %31 = vector.load %arg7[%c0_21, %c0_22] : memref<32x128xf32, #tpu.memory_space<vmem>>, vector<32x128xf32>
    %cst_23 = arith.constant dense<0.000000e+00> : vector<16x128xf32>
    %32 = tpu.matmul %30, %31, %cst_23 {dimension_numbers = #tpu.dot_dimension_numbers<[1], [0], [0], [1], [0, 0, 1, 1], [], []>} : vector<16x32xf32>, vector<32x128xf32>, vector<16x128xf32> -> vector<16x128xf32>
    %c0_24 = arith.constant 0 : index
    %c0_25 = arith.constant 0 : index
    %33 = vector.load %arg8[%c0_24, %c0_25] : memref<1x128xf32, #tpu.memory_space<vmem>>, vector<1x128xf32>
    %34 = vector.broadcast %33 : vector<1x128xf32> to vector<16x128xf32>
    %35 = arith.addf %32, %34 : vector<16x128xf32>
    %c0_26 = arith.constant 0 : index
    %c0_27 = arith.constant 0 : index
    %36 = vector.load %arg9[%c0_26, %c0_27] : memref<16x128xf32, #tpu.memory_space<vmem>>, vector<16x128xf32>
    tpu.vector_store %arg9[%c0_26, %c0_27], %35 {strides = array<i32>} : memref<16x128xf32, #tpu.memory_space<vmem>>, vector<16x128xf32>,
    return
  }
}

</mosaic_0001>

<llo_original>
// kernel: tpu_custom_call.1
$region0: #{tpu_custom_call.1}
  #allocation0 [shape = 'u32[]', space=smem, size = 0x4, offset = 0x4, fixed_abs, tag = 'smem constant byte address 0x4 - core index']
  #allocation1 [shape = 'u32[144,128]{1,0:T(1,128)}', space=vmem, size = 0x12000, scoped, tag = 'internal scratch']
  %s0 = inlined_call_operand.vmem [shape: s32[16,1], index: 0, kind: input, shape index: {}]
  %s1 = inlined_call_operand.vmem [shape: f32[128,32], index: 1, kind: input, shape index: {}]
  %s2 = inlined_call_operand.vmem [shape: f32[16,32], index: 2, kind: input, shape index: {}]
  %s3 = inlined_call_operand.vmem [shape: f32[32,32], index: 3, kind: input, shape index: {}]
  %s4 = inlined_call_operand.vmem [shape: f32[32,32], index: 4, kind: input, shape index: {}]
  %s5 = inlined_call_operand.vmem [shape: f32[32,32], index: 5, kind: input, shape index: {}]
  %s6 = inlined_call_operand.vmem [shape: f32[16,16], index: 6, kind: input, shape index: {}]
  %s7 = inlined_call_operand.vmem [shape: f32[32,128], index: 7, kind: input, shape index: {}]
  %s8 = inlined_call_operand.vmem [shape: f32[1,128], index: 8, kind: input, shape index: {}]
  %s9 = inlined_call_operand.hbm [shape: f32[16,128], index: 9, kind: output, shape index: {}]
  %s10 = sld [smem:[#allocation0]]
  $region46: #{tpu_custom_call.1} parent=0
    _
  %s12 = ssub.s32 1, %s10
  %s13 = scalar_select 0, %s12, %s10
  $region1: #{tpu_custom_call.1} parent=0
    #allocation2 [shape = 'u8[8192]{0}', space=vmem, size = 0x2000, scoped, tag = 'output window, operand 0, single buffered']
    #allocation3 [shape = 's32[1]{0}', space=sflag, size = 0x4, scoped, tag = 'scoped memory for tpu_custom_call.1']
    %14 = vsyncpa [#allocation3], 0
    // Predicated region
    $region2: #{tpu_custom_call.1} parent=1 // pred_check
      _
    $region3: #{tpu_custom_call.1} parent=1 // pred_check_branch
      %16 = sbr.rel (0) target = $region5
    $region4: #{tpu_custom_call.1} parent=1 // pred_region
      _
    $region5: #{tpu_custom_call.1} parent=1 // pred_fallthru
      _
    // Predicated region
    $region6: #{tpu_custom_call.1} parent=1 // pred_check
      _
    $region7: #{tpu_custom_call.1} parent=1 // pred_check_branch
      %18 = sbr.rel (0) target = $region9
    $region8: #{tpu_custom_call.1} parent=1 // pred_region
      _
    $region9: #{tpu_custom_call.1} parent=1 // pred_fallthru
      _
    // Predicated region
    $region10: #{tpu_custom_call.1} parent=1 // pred_check
      _
    $region11: #{tpu_custom_call.1} parent=1 // pred_check_branch
      %20 = sbr.rel (0) target = $region13
    $region12: #{tpu_custom_call.1} parent=1 // pred_region
      _
    $region13: #{tpu_custom_call.1} parent=1 // pred_fallthru
      _
    // Predicated region
    $region14: #{tpu_custom_call.1} parent=1 // pred_check
      _
    $region15: #{tpu_custom_call.1} parent=1 // pred_check_branch
      %22 = sbr.rel (0) target = $region17
    $region16: #{tpu_custom_call.1} parent=1 // pred_region
      _
    $region17: #{tpu_custom_call.1} parent=1 // pred_fallthru
      _
    // Predicated region
    $region18: #{tpu_custom_call.1} parent=1 // pred_check
      _
    $region19: #{tpu_custom_call.1} parent=1 // pred_check_branch
      %24 = sbr.rel (0) target = $region21
    $region20: #{tpu_custom_call.1} parent=1 // pred_region
      _
    $region21: #{tpu_custom_call.1} parent=1 // pred_fallthru
      _
    // Predicated region
    $region22: #{tpu_custom_call.1} parent=1 // pred_check
      _
    $region23: #{tpu_custom_call.1} parent=1 // pred_check_branch
      %26 = sbr.rel (0) target = $region25
    $region24: #{tpu_custom_call.1} parent=1 // pred_region
      _
    $region25: #{tpu_custom_call.1} parent=1 // pred_fallthru
      _
    // Predicated region
    $region26: #{tpu_custom_call.1} parent=1 // pred_check
      _
    $region27: #{tpu_custom_call.1} parent=1 // pred_check_branch
      %28 = sbr.rel (0) target = $region29
    $region28: #{tpu_custom_call.1} parent=1 // pred_region
      _
    $region29: #{tpu_custom_call.1} parent=1 // pred_fallthru
      _
    // Predicated region
    $region30: #{tpu_custom_call.1} parent=1 // pred_check
      _
    $region31: #{tpu_custom_call.1} parent=1 // pred_check_branch
      %30 = sbr.rel (0) target = $region33
    $region32: #{tpu_custom_call.1} parent=1 // pred_region
      _
    $region33: #{tpu_custom_call.1} parent=1 // pred_fallthru
      _
    // Predicated region
    $region34: #{tpu_custom_call.1} parent=1 // pred_check
      _
    $region35: #{tpu_custom_call.1} parent=1 // pred_check_branch
      %32 = sbr.rel (0) target = $region37
    $region36: #{tpu_custom_call.1} parent=1 // pred_region
      _
    $region37: #{tpu_custom_call.1} parent=1 // pred_fallthru
      _
    %v33 = vlaneseq
    %v34 = vand.u32 %v33, 127
    %v35 = vld [vmem:[%s0] sm:$0xff]
    %v36 = vld [vmem:[%s0 + $0x8] sm:$0xff]
    %37 = vset.pattern.permute.xlu0 0
    %38 = vperm.xlu0 %37, %v35
    %v39 = vpop.permute.xlu0 %38
    %40 = vset.pattern.permute.xlu0 0
    %41 = vperm.xlu0 %40, %v36
    %v42 = vpop.permute.xlu0 %41
    %vm43 = vcmp.eq.s32.totalorder %v34, %v39
    %vm44 = vcmp.eq.s32.totalorder %v34, %v42
    %v45 = vsel %vm43, 1, 0
    %v46 = vsel %vm44, 1, 0
    %v47 = vcvt.s32.f32 %v45
    %v48 = vcvt.s32.f32 %v46
    %v49 = vld [vmem:[%s1] sm:$0xff]
    %v50 = vld [vmem:[%s1 + $0x8] sm:$0xff]
    %v51 = vld [vmem:[%s1 + $0x10] sm:$0xff]
    %v52 = vld [vmem:[%s1 + $0x18] sm:$0xff]
    %v53 = vld [vmem:[%s1 + $0x20] sm:$0xff]
    %v54 = vld [vmem:[%s1 + $0x28] sm:$0xff]
    %v55 = vld [vmem:[%s1 + $0x30] sm:$0xff]
    %v56 = vld [vmem:[%s1 + $0x38] sm:$0xff]
    %v57 = vld [vmem:[%s1 + $0x40] sm:$0xff]
    %v58 = vld [vmem:[%s1 + $0x48] sm:$0xff]
    %v59 = vld [vmem:[%s1 + $0x50] sm:$0xff]
    %v60 = vld [vmem:[%s1 + $0x58] sm:$0xff]
    %v61 = vld [vmem:[%s1 + $0x60] sm:$0xff]
    %v62 = vld [vmem:[%s1 + $0x68] sm:$0xff]
    %v63 = vld [vmem:[%s1 + $0x70] sm:$0xff]
    %v64 = vld [vmem:[%s1 + $0x78] sm:$0xff]
    %v65 = vld [vmem:[%s2] sm:$0xff]
    %v66 = vld [vmem:[%s2 + $0x8] sm:$0xff]
    %67 = vmatprep.subr.mxu0 0.0
    %68 = vmatpush1.msra.mxu0 %v49
    %69 = vmatprep.subr.mxu0 0.0
    %70 = vmatpush1.msra.mxu0 %v50
    %71 = vmatprep.subr.mxu0 0.0
    %72 = vmatpush1.msra.mxu0 %v51
    %73 = vmatprep.subr.mxu0 0.0
    %74 = vmatpush1.msra.mxu0 %v52
    %75 = vmatprep.subr.mxu0 0.0
    %76 = vmatpush1.msra.mxu0 %v53
    %77 = vmatprep.subr.mxu0 0.0
    %78 = vmatpush1.msra.mxu0 %v54
    %79 = vmatprep.subr.mxu0 0.0
    %80 = vmatpush1.msra.mxu0 %v55
    %81 = vmatprep.subr.mxu0 0.0
    %82 = vmatpush1.msra.mxu0 %v56
    %83 = vmatprep.subr.mxu0 0.0
    %84 = vmatpush1.msra.mxu0 %v57
    %85 = vmatprep.subr.mxu0 0.0
    %86 = vmatpush1.msra.mxu0 %v58
    %87 = vmatprep.subr.mxu0 0.0
    %88 = vmatpush1.msra.mxu0 %v59
    %89 = vmatprep.subr.mxu0 0.0
    %90 = vmatpush1.msra.mxu0 %v60
    %91 = vmatprep.subr.mxu0 0.0
    %92 = vmatpush1.msra.mxu0 %v61
    %93 = vmatprep.subr.mxu0 0.0
    %94 = vmatpush1.msra.mxu0 %v62
    %95 = vmatprep.subr.mxu0 0.0
    %96 = vmatpush1.msra.mxu0 %v63
    %97 = vmatprep.subr.mxu0 0.0
    %98 = vmatpush1.msra.mxu0 %v64
    %99 = vmatprep.subr.mxu0 0.0
    %100 = vmatpush1.msra.mxu0 0.0
    %101 = vmatprep.subr.mxu0 0.0
    %102 = vmatpush1.msra.mxu0 0.0
    %103 = vmatprep.subr.mxu0 0.0
    %104 = vmatpush1.msra.mxu0 0.0
    %105 = vmatprep.subr.mxu0 0.0
    %106 = vmatpush1.msra.mxu0 0.0
    %107 = vmatprep.subr.mxu0 0.0
    %108 = vmatpush1.msra.mxu0 0.0
    %109 = vmatprep.subr.mxu0 0.0
    %110 = vmatpush1.msra.mxu0 0.0
    %111 = vmatprep.subr.mxu0 0.0
    %112 = vmatpush1.msra.mxu0 0.0
    %113 = vmatprep.subr.mxu0 0.0
    %114 = vmatpush1.msra.mxu0 0.0
    %115 = vmatprep.subr.mxu0 0.0
    %116 = vmatpush1.msra.mxu0 0.0
    %117 = vmatprep.subr.mxu0 0.0
    %118 = vmatpush1.msra.mxu0 0.0
    %119 = vmatprep.subr.mxu0 0.0
    %120 = vmatpush1.msra.mxu0 0.0
    %121 = vmatprep.subr.mxu0 0.0
    %122 = vmatpush1.msra.mxu0 0.0
    %123 = vmatprep.subr.mxu0 0.0
    %124 = vmatpush1.msra.mxu0 0.0
    %125 = vmatprep.subr.mxu0 0.0
    %126 = vmatpush1.msra.mxu0 0.0
    %127 = vmatprep.subr.mxu0 0.0
    %128 = vmatpush1.msra.mxu0 0.0
    %129 = vmatprep.subr.mxu0 0.0
    %130 = vmatpush1.msra.mxu0 0.0
    %131 = vmatprep.mubr.f32.mxu0 0.0
    %132 = vmatmul.mubr.f32.gmra.mrb[0].mxu0 %v47
    %v133 = vpop.f32.mrb[0].mxu0
    %v134 = vadd.f32 %v65, %v133
    %v135 = vpop.f32.mrb[0].mxu0
    %136 = vmatprep.mubr.f32.mxu0 0.0
    %137 = vmatmul.mubr.f32.gmra.mrb[0].mxu0 %v48
    %v138 = vpop.f32.mrb[0].mxu0
    %v139 = vadd.f32 %v66, %v138
    %v140 = vpop.f32.mrb[0].mxu0
    %141 = vdwg.mxu0
    %v142 = vld [vmem:[%s3] sm:$0xff]
    %v143 = vld [vmem:[%s3 + $0x8] sm:$0xff]
    %v144 = vld [vmem:[%s3 + $0x10] sm:$0xff]
    %v145 = vld [vmem:[%s3 + $0x18] sm:$0xff]
    %vm146 = vcmask 261120
    %v148 = vsel %vm146, %v134, 0
    %v151 = vsel %vm146, %v139, 0
    %153 = vmatprep.subr.mxu0 0.0
    %154 = vmatpush1.msra.mxu0 %v142
    %155 = vmatprep.subr.mxu0 0.0
    %156 = vmatpush1.msra.mxu0 %v143
    %157 = vmatprep.subr.mxu0 0.0
    %158 = vmatpush1.msra.mxu0 %v144
    %159 = vmatprep.subr.mxu0 0.0
    %160 = vmatpush1.msra.mxu0 %v145
    %161 = vmatprep.subr.mxu0 0.0
    %162 = vmatpush1.msra.mxu0 0.0
    %163 = vmatprep.subr.mxu0 0.0
    %164 = vmatpush1.msra.mxu0 0.0
    %165 = vmatprep.subr.mxu0 0.0
    %166 = vmatpush1.msra.mxu0 0.0
    %167 = vmatprep.subr.mxu0 0.0
    %168 = vmatpush1.msra.mxu0 0.0
    %169 = vmatprep.subr.mxu0 0.0
    %170 = vmatpush1.msra.mxu0 0.0
    %171 = vmatprep.subr.mxu0 0.0
    %172 = vmatpush1.msra.mxu0 0.0
    %173 = vmatprep.subr.mxu0 0.0
    %174 = vmatpush1.msra.mxu0 0.0
    %175 = vmatprep.subr.mxu0 0.0
    %176 = vmatpush1.msra.mxu0 0.0
    %177 = vmatprep.subr.mxu0 0.0
    %178 = vmatpush1.msra.mxu0 0.0
    %179 = vmatprep.subr.mxu0 0.0
    %180 = vmatpush1.msra.mxu0 0.0
    %181 = vmatprep.subr.mxu0 0.0
    %182 = vmatpush1.msra.mxu0 0.0
    %183 = vmatprep.subr.mxu0 0.0
    %184 = vmatpush1.msra.mxu0 0.0
    %185 = vmatprep.subr.mxu0 0.0
    %186 = vmatpush1.msra.mxu0 0.0
    %187 = vmatprep.subr.mxu0 0.0
    %188 = vmatpush1.msra.mxu0 0.0
    %189 = vmatprep.subr.mxu0 0.0
    %190 = vmatpush1.msra.mxu0 0.0
    %191 = vmatprep.subr.mxu0 0.0
    %192 = vmatpush1.msra.mxu0 0.0
    %193 = vmatprep.subr.mxu0 0.0
    %194 = vmatpush1.msra.mxu0 0.0
    %195 = vmatprep.subr.mxu0 0.0
    %196 = vmatpush1.msra.mxu0 0.0
    %197 = vmatprep.subr.mxu0 0.0
    %198 = vmatpush1.msra.mxu0 0.0
    %199 = vmatprep.subr.mxu0 0.0
    %200 = vmatpush1.msra.mxu0 0.0
    %201 = vmatprep.subr.mxu0 0.0
    %202 = vmatpush1.msra.mxu0 0.0
    %203 = vmatprep.subr.mxu0 0.0
    %204 = vmatpush1.msra.mxu0 0.0
    %205 = vmatprep.subr.mxu0 0.0
    %206 = vmatpush1.msra.mxu0 0.0
    %207 = vmatprep.subr.mxu0 0.0
    %208 = vmatpush1.msra.mxu0 0.0
    %209 = vmatprep.subr.mxu0 0.0
    %210 = vmatpush1.msra.mxu0 0.0
    %211 = vmatprep.subr.mxu0 0.0
    %212 = vmatpush1.msra.mxu0 0.0
    %213 = vmatprep.subr.mxu0 0.0
    %214 = vmatpush1.msra.mxu0 0.0
    %215 = vmatprep.subr.mxu0 0.0
    %216 = vmatpush1.msra.mxu0 0.0
    %217 = vmatprep.mubr.f32.mxu0 0.0
    %218 = vmatmul.mubr.f32.gmra.mrb[0].mxu0 %v148
    %v219 = vpop.f32.mrb[0].mxu0
    %v220 = vadd.f32 0.0, %v219
    %v221 = vpop.f32.mrb[0].mxu0
    %222 = vmatprep.mubr.f32.mxu0 0.0
    %223 = vmatmul.mubr.f32.gmra.mrb[0].mxu0 %v151
    %v224 = vpop.f32.mrb[0].mxu0
    %v225 = vadd.f32 0.0, %v224
    %v226 = vpop.f32.mrb[0].mxu0
    %227 = vdwg.mxu0
    %v228 = vld [vmem:[%s4] sm:$0xff]
    %v229 = vld [vmem:[%s4 + $0x8] sm:$0xff]
    %v230 = vld [vmem:[%s4 + $0x10] sm:$0xff]
    %v231 = vld [vmem:[%s4 + $0x18] sm:$0xff]
    %232 = vmatprep.subr.mxu0 0.0
    %233 = vmatpush1.msra.mxu0 %v228
    %234 = vmatprep.subr.mxu0 0.0
    %235 = vmatpush1.msra.mxu0 %v229
    %236 = vmatprep.subr.mxu0 0.0
    %237 = vmatpush1.msra.mxu0 %v230
    %238 = vmatprep.subr.mxu0 0.0
    %239 = vmatpush1.msra.mxu0 %v231
    %240 = vmatprep.subr.mxu0 0.0
    %241 = vmatpush1.msra.mxu0 0.0
    %242 = vmatprep.subr.mxu0 0.0
    %243 = vmatpush1.msra.mxu0 0.0
    %244 = vmatprep.subr.mxu0 0.0
    %245 = vmatpush1.msra.mxu0 0.0
    %246 = vmatprep.subr.mxu0 0.0
    %247 = vmatpush1.msra.mxu0 0.0
    %248 = vmatprep.subr.mxu0 0.0
    %249 = vmatpush1.msra.mxu0 0.0
    %250 = vmatprep.subr.mxu0 0.0
    %251 = vmatpush1.msra.mxu0 0.0
    %252 = vmatprep.subr.mxu0 0.0
    %253 = vmatpush1.msra.mxu0 0.0
    %254 = vmatprep.subr.mxu0 0.0
    %255 = vmatpush1.msra.mxu0 0.0
    %256 = vmatprep.subr.mxu0 0.0
    %257 = vmatpush1.msra.mxu0 0.0
    %258 = vmatprep.subr.mxu0 0.0
    %259 = vmatpush1.msra.mxu0 0.0
    %260 = vmatprep.subr.mxu0 0.0
    %261 = vmatpush1.msra.mxu0 0.0
    %262 = vmatprep.subr.mxu0 0.0
    %263 = vmatpush1.msra.mxu0 0.0
    %264 = vmatprep.subr.mxu0 0.0
    %265 = vmatpush1.msra.mxu0 0.0
    %266 = vmatprep.subr.mxu0 0.0
    %267 = vmatpush1.msra.mxu0 0.0
    %268 = vmatprep.subr.mxu0 0.0
    %269 = vmatpush1.msra.mxu0 0.0
    %270 = vmatprep.subr.mxu0 0.0
    %271 = vmatpush1.msra.mxu0 0.0
    %272 = vmatprep.subr.mxu0 0.0
    %273 = vmatpush1.msra.mxu0 0.0
    %274 = vmatprep.subr.mxu0 0.0
    %275 = vmatpush1.msra.mxu0 0.0
    %276 = vmatprep.subr.mxu0 0.0
    %277 = vmatpush1.msra.mxu0 0.0
    %278 = vmatprep.subr.mxu0 0.0
    %279 = vmatpush1.msra.mxu0 0.0
    %280 = vmatprep.subr.mxu0 0.0
    %281 = vmatpush1.msra.mxu0 0.0
    %282 = vmatprep.subr.mxu0 0.0
    %283 = vmatpush1.msra.mxu0 0.0
    %284 = vmatprep.subr.mxu0 0.0
    %285 = vmatpush1.msra.mxu0 0.0
    %286 = vmatprep.subr.mxu0 0.0
    %287 = vmatpush1.msra.mxu0 0.0
    %288 = vmatprep.subr.mxu0 0.0
    %289 = vmatpush1.msra.mxu0 0.0
    %290 = vmatprep.subr.mxu0 0.0
    %291 = vmatpush1.msra.mxu0 0.0
    %292 = vmatprep.subr.mxu0 0.0
    %293 = vmatpush1.msra.mxu0 0.0
    %294 = vmatprep.subr.mxu0 0.0
    %295 = vmatpush1.msra.mxu0 0.0
    %296 = vmatprep.mubr.f32.mxu0 0.0
    %297 = vmatmul.mubr.f32.gmra.mrb[0].mxu0 %v148
    %v298 = vpop.f32.mrb[0].mxu0
    %v299 = vadd.f32 0.0, %v298
    %v300 = vpop.f32.mrb[0].mxu0
    %301 = vmatprep.mubr.f32.mxu0 0.0
    %302 = vmatmul.mubr.f32.gmra.mrb[0].mxu0 %v151
    %v303 = vpop.f32.mrb[0].mxu0
    %v304 = vadd.f32 0.0, %v303
    %v305 = vpop.f32.mrb[0].mxu0
    %306 = vdwg.mxu0
    %v307 = vld [vmem:[%s5] sm:$0xff]
    %v308 = vld [vmem:[%s5 + $0x8] sm:$0xff]
    %v309 = vld [vmem:[%s5 + $0x10] sm:$0xff]
    %v310 = vld [vmem:[%s5 + $0x18] sm:$0xff]
    %311 = vmatprep.subr.mxu0 0.0
    %312 = vmatpush1.msra.mxu0 %v307
    %313 = vmatprep.subr.mxu0 0.0
    %314 = vmatpush1.msra.mxu0 %v308
    %315 = vmatprep.subr.mxu0 0.0
    %316 = vmatpush1.msra.mxu0 %v309
    %317 = vmatprep.subr.mxu0 0.0
    %318 = vmatpush1.msra.mxu0 %v310
    %319 = vmatprep.subr.mxu0 0.0
    %320 = vmatpush1.msra.mxu0 0.0
    %321 = vmatprep.subr.mxu0 0.0
    %322 = vmatpush1.msra.mxu0 0.0
    %323 = vmatprep.subr.mxu0 0.0
    %324 = vmatpush1.msra.mxu0 0.0
    %325 = vmatprep.subr.mxu0 0.0
    %326 = vmatpush1.msra.mxu0 0.0
    %327 = vmatprep.subr.mxu0 0.0
    %328 = vmatpush1.msra.mxu0 0.0
    %329 = vmatprep.subr.mxu0 0.0
    %330 = vmatpush1.msra.mxu0 0.0
    %331 = vmatprep.subr.mxu0 0.0
    %332 = vmatpush1.msra.mxu0 0.0
    %333 = vmatprep.subr.mxu0 0.0
    %334 = vmatpush1.msra.mxu0 0.0
    %335 = vmatprep.subr.mxu0 0.0
    %336 = vmatpush1.msra.mxu0 0.0
    %337 = vmatprep.subr.mxu0 0.0
    %338 = vmatpush1.msra.mxu0 0.0
    %339 = vmatprep.subr.mxu0 0.0
    %340 = vmatpush1.msra.mxu0 0.0
    %341 = vmatprep.subr.mxu0 0.0
    %342 = vmatpush1.msra.mxu0 0.0
    %343 = vmatprep.subr.mxu0 0.0
    %344 = vmatpush1.msra.mxu0 0.0
    %345 = vmatprep.subr.mxu0 0.0
    %346 = vmatpush1.msra.mxu0 0.0
    %347 = vmatprep.subr.mxu0 0.0
    %348 = vmatpush1.msra.mxu0 0.0
    %349 = vmatprep.subr.mxu0 0.0
    %350 = vmatpush1.msra.mxu0 0.0
    %351 = vmatprep.subr.mxu0 0.0
    %352 = vmatpush1.msra.mxu0 0.0
    %353 = vmatprep.subr.mxu0 0.0
    %354 = vmatpush1.msra.mxu0 0.0
    %355 = vmatprep.subr.mxu0 0.0
    %356 = vmatpush1.msra.mxu0 0.0
    %357 = vmatprep.subr.mxu0 0.0
    %358 = vmatpush1.msra.mxu0 0.0
    %359 = vmatprep.subr.mxu0 0.0
    %360 = vmatpush1.msra.mxu0 0.0
    %361 = vmatprep.subr.mxu0 0.0
    %362 = vmatpush1.msra.mxu0 0.0
    %363 = vmatprep.subr.mxu0 0.0
    %364 = vmatpush1.msra.mxu0 0.0
    %365 = vmatprep.subr.mxu0 0.0
    %366 = vmatpush1.msra.mxu0 0.0
    %367 = vmatprep.subr.mxu0 0.0
    %368 = vmatpush1.msra.mxu0 0.0
    %369 = vmatprep.subr.mxu0 0.0
    %370 = vmatpush1.msra.mxu0 0.0
    %371 = vmatprep.subr.mxu0 0.0
    %372 = vmatpush1.msra.mxu0 0.0
    %373 = vmatprep.subr.mxu0 0.0
    %374 = vmatpush1.msra.mxu0 0.0
    %375 = vmatprep.mubr.f32.mxu0 0.0
    %376 = vmatmul.mubr.f32.gmra.mrb[0].mxu0 %v148
    %v377 = vpop.f32.mrb[0].mxu0
    %v378 = vadd.f32 0.0, %v377
    %v379 = vpop.f32.mrb[0].mxu0
    %380 = vmatprep.mubr.f32.mxu0 0.0
    %381 = vmatmul.mubr.f32.gmra.mrb[0].mxu0 %v151
    %v382 = vpop.f32.mrb[0].mxu0
    %v383 = vadd.f32 0.0, %v382
    %v384 = vpop.f32.mrb[0].mxu0
    %385 = vdwg.mxu0
    %v387 = vsel %vm146, %v220, 0
    %v390 = vsel %vm146, %v225, 0
    %v393 = vsel %vm146, %v299, 0
    %v396 = vsel %vm146, %v304, 0
    %398 = vmatprep.subr.mxu0 0.0
    %399 = vmatpush1.xpose.msra.mxu0 %v393
    %400 = vmatprep.subr.mxu0 0.0
    %401 = vmatpush1.xpose.msra.mxu0 %v396
    %402 = vmatprep.subr.mxu0 0.0
    %403 = vmatpush1.xpose.msra.mxu0 0.0
    %404 = vmatprep.subr.mxu0 0.0
    %405 = vmatpush1.xpose.msra.mxu0 0.0
    %406 = vmatprep.subr.mxu0 0.0
    %407 = vmatpush1.xpose.msra.mxu0 0.0
    %408 = vmatprep.subr.mxu0 0.0
    %409 = vmatpush1.xpose.msra.mxu0 0.0
    %410 = vmatprep.subr.mxu0 0.0
    %411 = vmatpush1.xpose.msra.mxu0 0.0
    %412 = vmatprep.subr.mxu0 0.0
    %413 = vmatpush1.xpose.msra.mxu0 0.0
    %414 = vmatprep.subr.mxu0 0.0
    %415 = vmatpush1.xpose.msra.mxu0 0.0
    %416 = vmatprep.subr.mxu0 0.0
    %417 = vmatpush1.xpose.msra.mxu0 0.0
    %418 = vmatprep.subr.mxu0 0.0
    %419 = vmatpush1.xpose.msra.mxu0 0.0
    %420 = vmatprep.subr.mxu0 0.0
    %421 = vmatpush1.xpose.msra.mxu0 0.0
    %422 = vmatprep.subr.mxu0 0.0
    %423 = vmatpush1.xpose.msra.mxu0 0.0
    %424 = vmatprep.subr.mxu0 0.0
    %425 = vmatpush1.xpose.msra.mxu0 0.0
    %426 = vmatprep.subr.mxu0 0.0
    %427 = vmatpush1.xpose.msra.mxu0 0.0
    %428 = vmatprep.subr.mxu0 0.0
    %429 = vmatpush1.xpose.msra.mxu0 0.0
    %430 = vmatprep.subr.mxu0 0.0
    %431 = vmatpush1.xpose.msra.mxu0 0.0
    %432 = vmatprep.subr.mxu0 0.0
    %433 = vmatpush1.xpose.msra.mxu0 0.0
    %434 = vmatprep.subr.mxu0 0.0
    %435 = vmatpush1.xpose.msra.mxu0 0.0
    %436 = vmatprep.subr.mxu0 0.0
    %437 = vmatpush1.xpose.msra.mxu0 0.0
    %438 = vmatprep.subr.mxu0 0.0
    %439 = vmatpush1.xpose.msra.mxu0 0.0
    %440 = vmatprep.subr.mxu0 0.0
    %441 = vmatpush1.xpose.msra.mxu0 0.0
    %442 = vmatprep.subr.mxu0 0.0
    %443 = vmatpush1.xpose.msra.mxu0 0.0
    %444 = vmatprep.subr.mxu0 0.0
    %445 = vmatpush1.xpose.msra.mxu0 0.0
    %446 = vmatprep.subr.mxu0 0.0
    %447 = vmatpush1.xpose.msra.mxu0 0.0
    %448 = vmatprep.subr.mxu0 0.0
    %449 = vmatpush1.xpose.msra.mxu0 0.0
    %450 = vmatprep.subr.mxu0 0.0
    %451 = vmatpush1.xpose.msra.mxu0 0.0
    %452 = vmatprep.subr.mxu0 0.0
    %453 = vmatpush1.xpose.msra.mxu0 0.0
    %454 = vmatprep.subr.mxu0 0.0
    %455 = vmatpush1.xpose.msra.mxu0 0.0
    %456 = vmatprep.subr.mxu0 0.0
    %457 = vmatpush1.xpose.msra.mxu0 0.0
    %458 = vmatprep.subr.mxu0 0.0
    %459 = vmatpush1.xpose.msra.mxu0 0.0
    %460 = vmatprep.subr.mxu0 0.0
    %461 = vmatpush1.xpose.msra.mxu0 0.0
    %462 = vmatprep.mubr.f32.mxu0 0.0
    %463 = vmatmul.mubr.f32.gmra.mrb[0].mxu0 %v387
    %v464 = vpop.f32.mrb[0].mxu0
    %v465 = vadd.f32 0.0, %v464
    %v466 = vpop.f32.mrb[0].mxu0
    %467 = vmatprep.mubr.f32.mxu0 0.0
    %468 = vmatmul.mubr.f32.gmra.mrb[0].mxu0 %v390
    %v469 = vpop.f32.mrb[0].mxu0
    %v470 = vadd.f32 0.0, %v469
    %v471 = vpop.f32.mrb[0].mxu0
    %472 = vdwg.mxu0
    %v473 = vmul.f32 %v465, 0.17677669
    %v474 = vmul.f32 %v470, 0.17677669
    %v475 = vld [vmem:[%s6] sm:$0xff]
    %v476 = vld [vmem:[%s6 + $0x8] sm:$0xff]
    %v477 = vadd.f32 %v473, %v475
    %v478 = vadd.f32 %v474, %v476
    %vm479 = vcmask 130048
    %v480 = vsel %vm479, %v477, -inf
    %481 = vmax.xlane.f32.xlu0 %v480
    %v482 = vpop.xlane.xlu0 %481
    %v483 = vsel %vm479, %v478, -inf
    %484 = vmax.xlane.f32.xlu0 %v483
    %v485 = vpop.xlane.xlu0 %484
    %v486 = vsub.f32 %v477, %v482
    %v487 = vsub.f32 %v478, %v485
    %v488 = vmul.f32 %v486, 1.442695
    %v489 = vpow.pop %v488
    %v490 = vmul.f32 %v487, 1.442695
    %v491 = vpow.pop %v490
    %v492 = vsel %vm479, %v489, 0.0
    %493 = vadd.xlane.f32.xlu0 %v492
    %v494 = vpop.xlane.xlu0 %493
    %v495 = vsel %vm479, %v491, 0.0
    %496 = vadd.xlane.f32.xlu0 %v495
    %v497 = vpop.xlane.xlu0 %496
    %v498 = vrcp.pop %v494
    %v499 = vmul.f32 %v489, %v498
    %v500 = vrcp.pop %v497
    %v501 = vmul.f32 %v491, %v500
    %v503 = vsel %vm479, %v499, 0
    %v506 = vsel %vm479, %v501, 0
    %508 = vmatprep.subr.mxu0 0.0
    %509 = vmatpush1.msra.mxu0 %v378
    %510 = vmatprep.subr.mxu0 0.0
    %511 = vmatpush1.msra.mxu0 %v383
    %512 = vmatprep.subr.mxu0 0.0
    %513 = vmatpush1.msra.mxu0 0.0
    %514 = vmatprep.subr.mxu0 0.0
    %515 = vmatpush1.msra.mxu0 0.0
    %516 = vmatprep.subr.mxu0 0.0
    %517 = vmatpush1.msra.mxu0 0.0
    %518 = vmatprep.subr.mxu0 0.0
    %519 = vmatpush1.msra.mxu0 0.0
    %520 = vmatprep.subr.mxu0 0.0
    %521 = vmatpush1.msra.mxu0 0.0
    %522 = vmatprep.subr.mxu0 0.0
    %523 = vmatpush1.msra.mxu0 0.0
    %524 = vmatprep.subr.mxu0 0.0
    %525 = vmatpush1.msra.mxu0 0.0
    %526 = vmatprep.subr.mxu0 0.0
    %527 = vmatpush1.msra.mxu0 0.0
    %528 = vmatprep.subr.mxu0 0.0
    %529 = vmatpush1.msra.mxu0 0.0
    %530 = vmatprep.subr.mxu0 0.0
    %531 = vmatpush1.msra.mxu0 0.0
    %532 = vmatprep.subr.mxu0 0.0
    %533 = vmatpush1.msra.mxu0 0.0
    %534 = vmatprep.subr.mxu0 0.0
    %535 = vmatpush1.msra.mxu0 0.0
    %536 = vmatprep.subr.mxu0 0.0
    %537 = vmatpush1.msra.mxu0 0.0
    %538 = vmatprep.subr.mxu0 0.0
    %539 = vmatpush1.msra.mxu0 0.0
    %540 = vmatprep.subr.mxu0 0.0
    %541 = vmatpush1.msra.mxu0 0.0
    %542 = vmatprep.subr.mxu0 0.0
    %543 = vmatpush1.msra.mxu0 0.0
    %544 = vmatprep.subr.mxu0 0.0
    %545 = vmatpush1.msra.mxu0 0.0
    %546 = vmatprep.subr.mxu0 0.0
    %547 = vmatpush1.msra.mxu0 0.0
    %548 = vmatprep.subr.mxu0 0.0
    %549 = vmatpush1.msra.mxu0 0.0
    %550 = vmatprep.subr.mxu0 0.0
    %551 = vmatpush1.msra.mxu0 0.0
    %552 = vmatprep.subr.mxu0 0.0
    %553 = vmatpush1.msra.mxu0 0.0
    %554 = vmatprep.subr.mxu0 0.0
    %555 = vmatpush1.msra.mxu0 0.0
    %556 = vmatprep.subr.mxu0 0.0
    %557 = vmatpush1.msra.mxu0 0.0
    %558 = vmatprep.subr.mxu0 0.0
    %559 = vmatpush1.msra.mxu0 0.0
    %560 = vmatprep.subr.mxu0 0.0
    %561 = vmatpush1.msra.mxu0 0.0
    %562 = vmatprep.subr.mxu0 0.0
    %563 = vmatpush1.msra.mxu0 0.0
    %564 = vmatprep.subr.mxu0 0.0
    %565 = vmatpush1.msra.mxu0 0.0
    %566 = vmatprep.subr.mxu0 0.0
    %567 = vmatpush1.msra.mxu0 0.0
    %568 = vmatprep.subr.mxu0 0.0
    %569 = vmatpush1.msra.mxu0 0.0
    %570 = vmatprep.subr.mxu0 0.0
    %571 = vmatpush1.msra.mxu0 0.0
    %572 = vmatprep.mubr.f32.mxu0 0.0
    %573 = vmatmul.mubr.f32.gmra.mrb[0].mxu0 %v503
    %v574 = vpop.f32.mrb[0].mxu0
    %v575 = vadd.f32 0.0, %v574
    %v576 = vpop.f32.mrb[0].mxu0
    %577 = vmatprep.mubr.f32.mxu0 0.0
    %578 = vmatmul.mubr.f32.gmra.mrb[0].mxu0 %v506
    %v579 = vpop.f32.mrb[0].mxu0
    %v580 = vadd.f32 0.0, %v579
    %v581 = vpop.f32.mrb[0].mxu0
    %582 = vdwg.mxu0
    %v583 = vld [vmem:[%s7] sm:$0xff]
    %v584 = vld [vmem:[%s7 + $0x8] sm:$0xff]
    %v585 = vld [vmem:[%s7 + $0x10] sm:$0xff]
    %v586 = vld [vmem:[%s7 + $0x18] sm:$0xff]
    %v587 = vld [vmem:[%s8] sm:$0x1]
    %v589 = vlaneseq
    %v590 = vshrl.u32 %v589, 7
    %v591 = vsub.s32 0, %v590
    %v592 = vrot.slane %v587, %v591
    %v595 = vsel %vm146, %v575, 0
    %v598 = vsel %vm146, %v580, 0
    %600 = vmatprep.subr.mxu0 0.0
    %601 = vmatpush1.msra.mxu0 %v583
    %602 = vmatprep.subr.mxu0 0.0
    %603 = vmatpush1.msra.mxu0 %v584
    %604 = vmatprep.subr.mxu0 0.0
    %605 = vmatpush1.msra.mxu0 %v585
    %606 = vmatprep.subr.mxu0 0.0
    %607 = vmatpush1.msra.mxu0 %v586
    %608 = vmatprep.subr.mxu0 0.0
    %609 = vmatpush1.msra.mxu0 0.0
    %610 = vmatprep.subr.mxu0 0.0
    %611 = vmatpush1.msra.mxu0 0.0
    %612 = vmatprep.subr.mxu0 0.0
    %613 = vmatpush1.msra.mxu0 0.0
    %614 = vmatprep.subr.mxu0 0.0
    %615 = vmatpush1.msra.mxu0 0.0
    %616 = vmatprep.subr.mxu0 0.0
    %617 = vmatpush1.msra.mxu0 0.0
    %618 = vmatprep.subr.mxu0 0.0
    %619 = vmatpush1.msra.mxu0 0.0
    %620 = vmatprep.subr.mxu0 0.0
    %621 = vmatpush1.msra.mxu0 0.0
    %622 = vmatprep.subr.mxu0 0.0
    %623 = vmatpush1.msra.mxu0 0.0
    %624 = vmatprep.subr.mxu0 0.0
    %625 = vmatpush1.msra.mxu0 0.0
    %626 = vmatprep.subr.mxu0 0.0
    %627 = vmatpush1.msra.mxu0 0.0
    %628 = vmatprep.subr.mxu0 0.0
    %629 = vmatpush1.msra.mxu0 0.0
    %630 = vmatprep.subr.mxu0 0.0
    %631 = vmatpush1.msra.mxu0 0.0
    %632 = vmatprep.subr.mxu0 0.0
    %633 = vmatpush1.msra.mxu0 0.0
    %634 = vmatprep.subr.mxu0 0.0
    %635 = vmatpush1.msra.mxu0 0.0
    %636 = vmatprep.subr.mxu0 0.0
    %637 = vmatpush1.msra.mxu0 0.0
    %638 = vmatprep.subr.mxu0 0.0
    %639 = vmatpush1.msra.mxu0 0.0
    %640 = vmatprep.subr.mxu0 0.0
    %641 = vmatpush1.msra.mxu0 0.0
    %642 = vmatprep.subr.mxu0 0.0
    %643 = vmatpush1.msra.mxu0 0.0
    %644 = vmatprep.subr.mxu0 0.0
    %645 = vmatpush1.msra.mxu0 0.0
    %646 = vmatprep.subr.mxu0 0.0
    %647 = vmatpush1.msra.mxu0 0.0
    %648 = vmatprep.subr.mxu0 0.0
    %649 = vmatpush1.msra.mxu0 0.0
    %650 = vmatprep.subr.mxu0 0.0
    %651 = vmatpush1.msra.mxu0 0.0
    %652 = vmatprep.subr.mxu0 0.0
    %653 = vmatpush1.msra.mxu0 0.0
    %654 = vmatprep.subr.mxu0 0.0
    %655 = vmatpush1.msra.mxu0 0.0
    %656 = vmatprep.subr.mxu0 0.0
    %657 = vmatpush1.msra.mxu0 0.0
    %658 = vmatprep.subr.mxu0 0.0
    %659 = vmatpush1.msra.mxu0 0.0
    %660 = vmatprep.subr.mxu0 0.0
    %661 = vmatpush1.msra.mxu0 0.0
    %662 = vmatprep.subr.mxu0 0.0
    %663 = vmatpush1.msra.mxu0 0.0
    %664 = vmatprep.mubr.f32.mxu0 0.0
    %665 = vmatmul.mubr.f32.gmra.mrb[0].mxu0 %v595
    %v666 = vpop.f32.mrb[0].mxu0
    %v667 = vadd.f32 %v592, %v666
    %v668 = vpop.f32.mrb[0].mxu0
    %669 = vmatprep.mubr.f32.mxu0 0.0
    %670 = vmatmul.mubr.f32.gmra.mrb[0].mxu0 %v598
    %v671 = vpop.f32.mrb[0].mxu0
    %v672 = vadd.f32 %v592, %v671
    %v673 = vpop.f32.mrb[0].mxu0
    %674 = vdwg.mxu0
    %675 = vst [vmem:[#allocation2] sm:$0xff] %v667
    %676 = vst [vmem:[#allocation2 + $0x8] sm:$0xff] %v672
    // Predicated region
    $region38: #{tpu_custom_call.1} parent=1 // pred_check
      _
    $region39: #{tpu_custom_call.1} parent=1 // pred_check_branch
      %678 = sbr.rel (0) target = $region41
    $region40: #{tpu_custom_call.1} parent=1 // pred_region
      %s680 = ssub.s32 256, 256
      %681 = vsyncadd [#allocation3], %s680
      %s682 = sshll.u32 [#allocation2], 4
      %s683 = int_to_ptr.vmem [resolvable:$true] %s682
      %688 = dma.vmem_to_hbm [thread:$0]  %s683, 256, %s9, [#allocation3], 128, 128, 8
    $region41: #{tpu_custom_call.1} parent=1 // pred_fallthru
      _
    // Predicated region
    $region42: #{tpu_custom_call.1} parent=1 // pred_check
      _
    $region43: #{tpu_custom_call.1} parent=1 // pred_check_branch
      %690 = sbr.rel (0) target = $region45
    $region44: #{tpu_custom_call.1} parent=1 // pred_region
      %691 = dma.done [#allocation3], 256
    $region45: #{tpu_custom_call.1} parent=1 // pred_fallthru
      _
    %692 = vsyncpa [#allocation3], 1

</llo_original>
